<compile_context>
chip_gen: v6e
topology: v6e:2x2x1
jax: 0.10.0
libtpu: 0.0.40
codegen_flags: <defaults>
</compile_context>

<pallas_src>
import functools

import jax
import jax.numpy as jnp
from jax.experimental import pallas as pl
from jax.experimental.pallas import tpu as pltpu


def _round_up(x, m):
    return (x + m - 1) // m * m


def bert_classify_head_kernel(
    cls_ref,    # (TB, H)      bf16  [CLS] embedding tile
    wp_ref,     # (H, H)       bf16  pooler weight (x @ W layout)
    bp_ref,     # (1, H)       f32   pooler bias
    weff_ref,   # (H, R_pad)   bf16  fused head weight (zero-padded columns)
    beff_ref,   # (1, R_pad)   f32   fused head bias (-1e30 in padded columns)
    out_ref,    # (TB, R_pad)  f32   softmax probabilities (padded cols ~ 0)
):
    x = cls_ref[...]

    # BERT pooler: tanh(cls @ Wp + bp)   (bf16 operands, f32 accumulate, f32 tanh)
    pooled = jnp.tanh(
        jnp.dot(x, wp_ref[...], preferred_element_type=jnp.float32) + bp_ref[...]
    )

    # Dropout(0.3) is identity at inference time.

    # Fused linear_1 -> linear_2 -> linear_3 (no activations between them, so the
    # product of the three weight matrices is mathematically identical).
    logits = (
        jnp.dot(pooled.astype(jnp.bfloat16), weff_ref[...],
                preferred_element_type=jnp.float32)
        + beff_ref[...]
    )  # padded columns carry -1e30 bias -> exp underflows to 0

    # Numerically stabilized softmax over the class axis, in f32.
    # Exact divide (not approx reciprocal) so row sums are 1 to f32 rounding.
    m = jnp.max(logits, axis=1, keepdims=True)
    e = jnp.exp(logits - m)
    denom = jnp.sum(e, axis=1, keepdims=True)
    out_ref[...] = (e / denom).astype(out_ref.dtype)


def prepare_params(params):
    """One-time parameter preparation (head fusion, padding, dtype casts).

    Keeping this out of the per-call path removes ~4 small XLA kernels and an
    (H, R_pad) HBM write per inference call.
    """
    H = params["wp"].shape[0]
    R = params["w3"].shape[1]
    # 128 keeps lane density for the usual small class counts; once R > 128,
    # pad to a 256 multiple to fill the 256-wide v6e/v7x MXU N dimension.
    R_pad = _round_up(R, 128) if R <= 128 else _round_up(R, 256)

    # Fuse the three activation-free head linears (exact algebraic identity).
    w_eff = params["w1"] @ params["w2"] @ params["w3"]                         # (H, R)
    b_eff = (params["b1"] @ params["w2"] + params["b2"]) @ params["w3"] \
        + params["b3"]                                                         # (1, R)

    w_eff_p = (jnp.zeros((H, R_pad), jnp.float32).at[:, :R].set(w_eff)
               .astype(jnp.bfloat16))
    # Padded class columns get a huge negative bias so softmax assigns them ~0 mass.
    b_eff_p = jnp.full((1, R_pad), -1e30, jnp.float32).at[:, :R].set(b_eff)

    return {
        "embedding": params["embedding"].astype(jnp.bfloat16),   # bf16 gather source
        "wp": params["wp"].astype(jnp.bfloat16),
        "bp": params["bp"].astype(jnp.float32),
        "w_eff": w_eff_p,
        "b_eff": b_eff_p,
    }


@functools.partial(jax.jit, static_argnames=("num_classes",))
def bert_classify_forward(input_ids, prepped, *, num_classes):
    """input_ids: (B, S) int32 token ids.  Returns (B, num_classes) probabilities."""
    # TODO(synk): stands in for the 24-layer bert-large encoder; only the [CLS]
    # token embedding is gathered (bf16, no full-sequence / f32 materialization).
    cls = prepped["embedding"][input_ids[:, 0]]          # (B, H) bf16

    B, H = cls.shape
    R_pad = prepped["w_eff"].shape[1]

    # ---- batch tiling --------------------------------------------------------
    B_pad8 = _round_up(B, 8)
    # >= 2 grid steps whenever possible (v7x megacore sharding), capped at 512
    # rows/step so per-step VMEM fits v5e's 16 MiB default scoped limit.
    TB = min(512, max(8, _round_up((B_pad8 + 1) // 2, 8)))
    B_pad = _round_up(B_pad8, TB)

    cls_p = jnp.pad(cls, ((0, B_pad - B), (0, 0)))       # bf16 pad, one XLA op

    grid = (B_pad // TB,)

    cost = pl.CostEstimate(
        flops=2 * B_pad * H * H + 2 * B_pad * H * R_pad,
        transcendentals=B_pad * (H + R_pad),
        bytes_accessed=(cls_p.size * 2 + prepped["wp"].size * 2
                        + prepped["w_eff"].size * 2
                        + prepped["bp"].size * 4 + prepped["b_eff"].size * 4
                        + B_pad * R_pad * 4),
    )

    probs_pad = pl.pallas_call(
        bert_classify_head_kernel,
        out_shape=jax.ShapeDtypeStruct((B_pad, R_pad), jnp.float32),
        grid=grid,
        in_specs=[
            pl.BlockSpec((TB, H), lambda i: (i, 0)),       # [CLS] tile (pipelined)
            pl.BlockSpec((H, H), lambda i: (0, 0)),        # pooler weight, resident
            pl.BlockSpec((1, H), lambda i: (0, 0)),        # pooler bias, resident
            pl.BlockSpec((H, R_pad), lambda i: (0, 0)),    # fused weight, resident
            pl.BlockSpec((1, R_pad), lambda i: (0, 0)),    # fused bias, resident
        ],
        out_specs=pl.BlockSpec((TB, R_pad), lambda i: (i, 0)),
        compiler_params=pltpu.CompilerParams(
            dimension_semantics=("parallel",),
        ),
        cost_estimate=cost,
    )(cls_p, prepped["wp"], prepped["bp"], prepped["w_eff"], prepped["b_eff"])

    return probs_pad[:B, :num_classes]


def init_params(key, vocab_size, hidden_size, result):
    ks = jax.random.split(key, 10)
    scale = 0.02

    def dense(k, fan_in, fan_out):
        return scale * jax.random.normal(k, (fan_in, fan_out), dtype=jnp.float32)

    return {
        "embedding": scale * jax.random.normal(ks[0], (vocab_size, hidden_size), jnp.float32),
        "wp": dense(ks[1], hidden_size, hidden_size),
        "bp": jnp.zeros((1, hidden_size), jnp.float32),
        "w1": dense(ks[2], hidden_size, 256),
        "b1": 0.01 * jnp.ones((1, 256), jnp.float32),
        "w2": dense(ks[3], 256, 64),
        "b2": 0.01 * jnp.ones((1, 64), jnp.float32),
        "w3": dense(ks[4], 64, result),
        "b3": jnp.zeros((1, result), jnp.float32),
    }


def _reference_forward(input_ids, params):
    """Pure-JAX f32 reference of the same (stubbed-encoder) forward."""
    cls = params["embedding"][input_ids[:, 0]]
    pooled = jnp.tanh(cls @ params["wp"] + params["bp"])
    h = pooled @ params["w1"] + params["b1"]
    h = h @ params["w2"] + params["b2"]
    logits = h @ params["w3"] + params["b3"]
    return jax.nn.softmax(logits, axis=1)


if __name__ == "__main__":
    key = jax.random.PRNGKey(0)
    k_params, k_ids = jax.random.split(key)

    # Small, forward-consistent shapes: batch=2, seq=8, hidden=32, vocab=64, classes=4.
    batch, seq, hidden, vocab, result = 2, 8, 32, 64, 4

    params = init_params(k_params, vocab, hidden, result)
    prepped = prepare_params(params)      # one-time prep (fusion, padding, casts)
    input_ids = jax.random.randint(k_ids, (batch, seq), 0, vocab, dtype=jnp.int32)

    probs = bert_classify_forward(input_ids, prepped, num_classes=result)
    probs = jax.block_until_ready(probs)

    assert probs.shape == (batch, result)
    # Exact f32 divide in the kernel -> softmax rows sum to 1 to f32 rounding.
    assert jnp.allclose(jnp.sum(probs, axis=1), 1.0, atol=1e-3), jnp.sum(probs, axis=1)
    ref = _reference_forward(input_ids, params)
    assert jnp.allclose(probs, ref, atol=5e-2), jnp.max(jnp.abs(probs - ref))

    print("KERNEL_OK")
</pallas_src>

<mosaic_0001>
module attributes {stable_mosaic.version = 11 : i64} {
  func.func @bert_classify_head_kernel(%arg0: i32, %arg1: memref<8x32xbf16, #tpu.memory_space<vmem>>, %arg2: memref<32x32xbf16, #tpu.memory_space<vmem>>, %arg3: memref<1x32xf32, #tpu.memory_space<vmem>>, %arg4: memref<32x128xbf16, #tpu.memory_space<vmem>>, %arg5: memref<1x128xf32, #tpu.memory_space<vmem>>, %arg6: memref<8x128xf32, #tpu.memory_space<vmem>>) attributes {dimension_semantics = [#tpu.dimension_semantics<parallel>], iteration_bounds = array<i64: 1>, scalar_prefetch = 0 : i64, scratch_operands = 0 : i64, tpu.core_type = #tpu.core_type<tc>, window_params = [{transform_indices = @transform_0, window_bounds = array<i64: 8, 32>}, {pipeline_mode = #tpu.pipeline_mode<synchronous>, transform_indices = @transform_1, window_bounds = array<i64: 32, 32>}, {pipeline_mode = #tpu.pipeline_mode<synchronous>, transform_indices = @transform_2, window_bounds = array<i64: 1, 32>}, {pipeline_mode = #tpu.pipeline_mode<synchronous>, transform_indices = @transform_3, window_bounds = array<i64: 32, 128>}, {pipeline_mode = #tpu.pipeline_mode<synchronous>, transform_indices = @transform_4, window_bounds = array<i64: 1, 128>}, {transform_indices = @transform_5, window_bounds = array<i64: 8, 128>}]} {
    %c0 = arith.constant 0 : index
    %c0_0 = arith.constant 0 : index
    %0 = vector.load %arg1[%c0, %c0_0] : memref<8x32xbf16, #tpu.memory_space<vmem>>, vector<8x32xbf16>
    %c0_1 = arith.constant 0 : index
    %c0_2 = arith.constant 0 : index
    %1 = vector.load %arg2[%c0_1, %c0_2] : memref<32x32xbf16, #tpu.memory_space<vmem>>, vector<32x32xbf16>
    %cst = arith.constant dense<0.000000e+00> : vector<8x32xf32>
    %2 = tpu.matmul %0, %1, %cst {dimension_numbers = #tpu.dot_dimension_numbers<[1], [0], [0], [1], [0, 0, 1, 1], [], []>} : vector<8x32xbf16>, vector<32x32xbf16>, vector<8x32xf32> -> vector<8x32xf32>
    %c0_3 = arith.constant 0 : index
    %c0_4 = arith.constant 0 : index
    %3 = vector.load %arg3[%c0_3, %c0_4] : memref<1x32xf32, #tpu.memory_space<vmem>>, vector<1x32xf32>
    %4 = vector.broadcast %3 : vector<1x32xf32> to vector<8x32xf32>
    %5 = arith.addf %2, %4 : vector<8x32xf32>
    %6 = math.tanh %5 : vector<8x32xf32>
    %7 = arith.truncf %6 : vector<8x32xf32> to vector<8x32xbf16>
    %c0_5 = arith.constant 0 : index
    %c0_6 = arith.constant 0 : index
    %8 = vector.load %arg4[%c0_5, %c0_6] : memref<32x128xbf16, #tpu.memory_space<vmem>>, vector<32x128xbf16>
    %cst_7 = arith.constant dense<0.000000e+00> : vector<8x128xf32>
    %9 = tpu.matmul %7, %8, %cst_7 {dimension_numbers = #tpu.dot_dimension_numbers<[1], [0], [0], [1], [0, 0, 1, 1], [], []>} : vector<8x32xbf16>, vector<32x128xbf16>, vector<8x128xf32> -> vector<8x128xf32>
    %c0_8 = arith.constant 0 : index
    %c0_9 = arith.constant 0 : index
    %10 = vector.load %arg5[%c0_8, %c0_9] : memref<1x128xf32, #tpu.memory_space<vmem>>, vector<1x128xf32>
    %11 = vector.broadcast %10 : vector<1x128xf32> to vector<8x128xf32>
    %12 = arith.addf %9, %11 : vector<8x128xf32>
    %cst_10 = arith.constant dense<0xFF800000> : vector<8xf32>
    %13 = vector.multi_reduction <maximumf>, %12, %cst_10 [1] : vector<8x128xf32> to vector<8xf32>
    %14 = vector.shape_cast %13 : vector<8xf32> to vector<8x1xf32>
    %15 = vector.broadcast %14 : vector<8x1xf32> to vector<8x128xf32>
    %16 = arith.subf %12, %15 : vector<8x128xf32>
    %17 = math.exp %16 : vector<8x128xf32>
    %cst_11 = arith.constant dense<0.000000e+00> : vector<8xf32>
    %18 = vector.multi_reduction <add>, %17, %cst_11 [1] : vector<8x128xf32> to vector<8xf32>
    %19 = vector.shape_cast %18 : vector<8xf32> to vector<8x1xf32>
    %20 = vector.broadcast %19 : vector<8x1xf32> to vector<8x128xf32>
    %21 = arith.divf %17, %20 : vector<8x128xf32>
    %c0_12 = arith.constant 0 : index
    %c0_13 = arith.constant 0 : index
    %22 = vector.load %arg6[%c0_12, %c0_13] : memref<8x128xf32, #tpu.memory_space<vmem>>, vector<8x128xf32>
    tpu.vector_store %arg6[%c0_12, %c0_13], %21 {strides = array<i32>} : memref<8x128xf32, #tpu.memory_space<vmem>>, vector<8x128xf32>,
    return
  }
  func.func @transform_0(%arg0: i32) -> (i32, i32) {
    %c0_i32 = arith.constant 0 : i32
    %c0_i32_0 = arith.constant 0 : i32
    return %arg0, %c0_i32 : i32, i32
  }
  func.func @transform_1(%arg0: i32) -> (i32, i32) {
    %c0_i32 = arith.constant 0 : i32
    %c0_i32_0 = arith.constant 0 : i32
    %c0_i32_1 = arith.constant 0 : i32
    return %c0_i32, %c0_i32_0 : i32, i32
  }
  func.func @transform_2(%arg0: i32) -> (i32, i32) {
    %c0_i32 = arith.constant 0 : i32
    %c0_i32_0 = arith.constant 0 : i32
    %c0_i32_1 = arith.constant 0 : i32
    return %c0_i32, %c0_i32_0 : i32, i32
  }
  func.func @transform_3(%arg0: i32) -> (i32, i32) {
    %c0_i32 = arith.constant 0 : i32
    %c0_i32_0 = arith.constant 0 : i32
    %c0_i32_1 = arith.constant 0 : i32
    return %c0_i32, %c0_i32_0 : i32, i32
  }
  func.func @transform_4(%arg0: i32) -> (i32, i32) {
    %c0_i32 = arith.constant 0 : i32
    %c0_i32_0 = arith.constant 0 : i32
    %c0_i32_1 = arith.constant 0 : i32
    return %c0_i32, %c0_i32_0 : i32, i32
  }
  func.func @transform_5(%arg0: i32) -> (i32, i32) {
    %c0_i32 = arith.constant 0 : i32
    %c0_i32_0 = arith.constant 0 : i32
    return %arg0, %c0_i32 : i32, i32
  }
}

</mosaic_0001>

<llo_original>
// kernel: bert_classify_forward.1
$region0: #{bert_classify_forward.1}
  #allocation0 [shape = 'u32[]', space=smem, size = 0x4, offset = 0x4, fixed_abs, tag = 'smem constant byte address 0x4 - core index']
  #allocation1 [shape = 'u32[144,128]{1,0:T(1,128)}', space=vmem, size = 0x12000, scoped, tag = 'internal scratch']
  %s0 = inlined_call_operand.vmem [shape: bf16[8,32], index: 0, kind: input, shape index: {}]
  %s1 = inlined_call_operand.vmem [shape: bf16[32,32], index: 1, kind: input, shape index: {}]
  %s2 = inlined_call_operand.vmem [shape: f32[1,32], index: 2, kind: input, shape index: {}]
  %s3 = inlined_call_operand.vmem [shape: bf16[32,128], index: 3, kind: input, shape index: {}]
  %s4 = inlined_call_operand.vmem [shape: f32[1,128], index: 4, kind: input, shape index: {}]
  %s5 = inlined_call_operand.vmem [shape: f32[8,128], index: 5, kind: output, shape index: {}]
  %s6 = sld [smem:[#allocation0]]
  $region30: #{bert_classify_forward.1} parent=0
    _
  %s8 = ssub.s32 1, %s6
  %s9 = scalar_select 0, %s8, %s6
  // Predicated region
  $region2: #{bert_classify_forward.1} parent=0 // pred_check
    _
  $region3: #{bert_classify_forward.1} parent=0 // pred_check_branch
    %11 = sbr.rel (0) target = $region5
  $region4: #{bert_classify_forward.1} parent=0 // pred_region
    _
  $region5: #{bert_classify_forward.1} parent=0 // pred_fallthru
    _
  // Predicated region
  $region6: #{bert_classify_forward.1} parent=0 // pred_check
    _
  $region7: #{bert_classify_forward.1} parent=0 // pred_check_branch
    %13 = sbr.rel (0) target = $region9
  $region8: #{bert_classify_forward.1} parent=0 // pred_region
    _
  $region9: #{bert_classify_forward.1} parent=0 // pred_fallthru
    _
  // Predicated region
  $region10: #{bert_classify_forward.1} parent=0 // pred_check
    _
  $region11: #{bert_classify_forward.1} parent=0 // pred_check_branch
    %15 = sbr.rel (0) target = $region13
  $region12: #{bert_classify_forward.1} parent=0 // pred_region
    _
  $region13: #{bert_classify_forward.1} parent=0 // pred_fallthru
    _
  // Predicated region
  $region14: #{bert_classify_forward.1} parent=0 // pred_check
    _
  $region15: #{bert_classify_forward.1} parent=0 // pred_check_branch
    %17 = sbr.rel (0) target = $region17
  $region16: #{bert_classify_forward.1} parent=0 // pred_region
    _
  $region17: #{bert_classify_forward.1} parent=0 // pred_fallthru
    _
  // Predicated region
  $region18: #{bert_classify_forward.1} parent=0 // pred_check
    _
  $region19: #{bert_classify_forward.1} parent=0 // pred_check_branch
    %19 = sbr.rel (0) target = $region21
  $region20: #{bert_classify_forward.1} parent=0 // pred_region
    _
  $region21: #{bert_classify_forward.1} parent=0 // pred_fallthru
    _
  %v21 = vld [vmem:[%s0] sm:$0xf]
  %v22 = vld [vmem:[%s1] sm:$0xf]
  %v23 = vld [vmem:[%s1 + $0x4] sm:$0xf]
  %v24 = vld [vmem:[%s1 + $0x8] sm:$0xf]
  %v25 = vld [vmem:[%s1 + $0xc] sm:$0xf]
  %v26 = vld [vmem:[%s2] sm:$0x1]
  %v28 = vlaneseq
  %v29 = vshrl.u32 %v28, 7
  %v30 = vsub.s32 0, %v29
  %v31 = vrot.slane %v26, %v30
  %v37 = vunpack.c.l.b16 %v22
  %v38 = vunpack.c.l.b16 %v23
  %v39 = vunpack.c.l.b16 %v24
  %v40 = vunpack.c.l.b16 %v25
  %v41 = vpack.c.b16 %v38, %v37
  %v42 = vpack.c.b16 %v40, %v39
  %vm45 = vcmask 261120
  %v47 = vsel %vm45, %v21, 0
  %49 = vmatprep.subr.bf16.mxu0 0
  %50 = vmatpush1.bf16.msra.mxu0 0
  %51 = vmatprep.subr.bf16.mxu0 0
  %52 = vmatpush1.bf16.msra.mxu0 0
  %53 = vmatprep.subr.bf16.mxu0 0
  %54 = vmatpush1.bf16.msra.mxu0 0
  %55 = vmatprep.subr.bf16.mxu0 0
  %56 = vmatpush1.bf16.msra.mxu0 0
  %57 = vmatprep.subr.bf16.mxu0 0
  %58 = vmatpush1.bf16.msra.mxu0 0
  %59 = vmatprep.subr.bf16.mxu0 0
  %60 = vmatpush1.bf16.msra.mxu0 0
  %61 = vmatprep.subr.bf16.mxu0 0
  %62 = vmatpush1.bf16.msra.mxu0 %v42
  %63 = vmatprep.subr.bf16.mxu0 0
  %64 = vmatpush1.bf16.msra.mxu0 %v41
  %65 = vmatprep.subr.bf16.mxu0 0
  %66 = vmatpush2.bf16.msra.mxu0 0
  %67 = vmatprep.subr.bf16.mxu0 0
  %68 = vmatpush2.bf16.msra.mxu0 0
  %69 = vmatprep.subr.bf16.mxu0 0
  %70 = vmatpush2.bf16.msra.mxu0 0
  %71 = vmatprep.subr.bf16.mxu0 0
  %72 = vmatpush2.bf16.msra.mxu0 0
  %73 = vmatprep.subr.bf16.mxu0 0
  %74 = vmatpush2.bf16.msra.mxu0 0
  %75 = vmatprep.subr.bf16.mxu0 0
  %76 = vmatpush2.bf16.msra.mxu0 0
  %77 = vmatprep.subr.bf16.mxu0 0
  %78 = vmatpush2.bf16.msra.mxu0 0
  %79 = vmatprep.subr.bf16.mxu0 0
  %80 = vmatpush2.bf16.msra.mxu0 0
  %81 = vmatprep.mubr.bf16.mxu0 0
  %82 = vmatmul.mubr.bf16.gmra.mxu0 %v47
  %v83 = vpop.f32.mrf.mxu0
  %v84 = vadd.f32 %v31, %v83
  %v85 = vpop.f32.mrf.mxu0
  %v86 = vpop.f32.mrf.mxu0
  %v87 = vpop.f32.mrf.mxu0
  %88 = vdwg.mxu0
  %v89 = vtanh.pop %v84
  %v90 = vpack.c.bf16 %v89, %v89
  %v91 = vld [vmem:[%s3] sm:$0xf]
  %v92 = vld [vmem:[%s3 + $0x4] sm:$0xf]
  %v93 = vld [vmem:[%s3 + $0x8] sm:$0xf]
  %v94 = vld [vmem:[%s3 + $0xc] sm:$0xf]
  %v95 = vld [vmem:[%s4] sm:$0x1]
  %v97 = vlaneseq
  %v98 = vshrl.u32 %v97, 7
  %v99 = vsub.s32 0, %v98
  %v100 = vrot.slane %v95, %v99
  %v106 = vunpack.c.l.b16 %v91
  %v107 = vunpack.c.l.b16 %v92
  %v108 = vunpack.c.l.b16 %v93
  %v109 = vunpack.c.l.b16 %v94
  %v110 = vpack.c.b16 %v107, %v106
  %v111 = vpack.c.b16 %v109, %v108
  %v115 = vsel %vm45, %v90, 0
  %117 = vmatprep.subr.bf16.mxu0 0
  %118 = vmatpush1.bf16.msra.mxu0 0
  %119 = vmatprep.subr.bf16.mxu0 0
  %120 = vmatpush1.bf16.msra.mxu0 0
  %121 = vmatprep.subr.bf16.mxu0 0
  %122 = vmatpush1.bf16.msra.mxu0 0
  %123 = vmatprep.subr.bf16.mxu0 0
  %124 = vmatpush1.bf16.msra.mxu0 0
  %125 = vmatprep.subr.bf16.mxu0 0
  %126 = vmatpush1.bf16.msra.mxu0 0
  %127 = vmatprep.subr.bf16.mxu0 0
  %128 = vmatpush1.bf16.msra.mxu0 0
  %129 = vmatprep.subr.bf16.mxu0 0
  %130 = vmatpush1.bf16.msra.mxu0 %v111
  %131 = vmatprep.subr.bf16.mxu0 0
  %132 = vmatpush1.bf16.msra.mxu0 %v110
  %133 = vmatprep.subr.bf16.mxu0 0
  %134 = vmatpush2.bf16.msra.mxu0 0
  %135 = vmatprep.subr.bf16.mxu0 0
  %136 = vmatpush2.bf16.msra.mxu0 0
  %137 = vmatprep.subr.bf16.mxu0 0
  %138 = vmatpush2.bf16.msra.mxu0 0
  %139 = vmatprep.subr.bf16.mxu0 0
  %140 = vmatpush2.bf16.msra.mxu0 0
  %141 = vmatprep.subr.bf16.mxu0 0
  %142 = vmatpush2.bf16.msra.mxu0 0
  %143 = vmatprep.subr.bf16.mxu0 0
  %144 = vmatpush2.bf16.msra.mxu0 0
  %145 = vmatprep.subr.bf16.mxu0 0
  %146 = vmatpush2.bf16.msra.mxu0 0
  %147 = vmatprep.subr.bf16.mxu0 0
  %148 = vmatpush2.bf16.msra.mxu0 0
  %149 = vmatprep.mubr.bf16.mxu0 0
  %150 = vmatmul.mubr.bf16.gmra.mxu0 %v115
  %v151 = vpop.f32.mrf.mxu0
  %v152 = vadd.f32 %v100, %v151
  %v153 = vpop.f32.mrf.mxu0
  %v154 = vpop.f32.mrf.mxu0
  %v155 = vpop.f32.mrf.mxu0
  %156 = vdwg.mxu0
  %157 = vmax.xlane.f32.xlu0 %v152
  %v158 = vpop.xlane.xlu0 %157
  %v159 = vsub.f32 %v152, %v158
  %v160 = vmul.f32 %v159, 1.442695
  %v161 = vpow.pop %v160
  %162 = vadd.xlane.f32.xlu0 %v161
  %v163 = vpop.xlane.xlu0 %162
  %v164 = vrcp.pop %v163
  %v165 = vmul.f32 %v161, %v164
  %166 = vst [vmem:[%s5] sm:$0xff] %v165
  // Predicated region
  $region22: #{bert_classify_forward.1} parent=0 // pred_check
    _
  $region23: #{bert_classify_forward.1} parent=0 // pred_check_branch
    %168 = sbr.rel (0) target = $region25
  $region24: #{bert_classify_forward.1} parent=0 // pred_region
    _
  $region25: #{bert_classify_forward.1} parent=0 // pred_fallthru
    _
  // Predicated region
  $region26: #{bert_classify_forward.1} parent=0 // pred_check
    _
  $region27: #{bert_classify_forward.1} parent=0 // pred_check_branch
    %170 = sbr.rel (0) target = $region29
  $region28: #{bert_classify_forward.1} parent=0 // pred_region
    _
  $region29: #{bert_classify_forward.1} parent=0 // pred_fallthru
    _

</llo_original>
